<compile_context>
chip_gen: v5e
topology: v5e:2x2
jax: 0.10.0
libtpu: 0.0.40
codegen_flags: <defaults>
</compile_context>

<pallas_src>
import functools

import jax
import jax.numpy as jnp
from jax.experimental import pallas as pl
from jax.experimental.pallas import tpu as pltpu


LANES = 512              # lane-dense last dim (multiple of 128)
MAX_TILE_ROWS = 1024     # 1024 x 512 x 4B = 2 MiB per fp32 buffer


def _round_up(n: int, m: int) -> int:
    return ((n + m - 1) // m) * m


def _aptx_kernel(x_ref, o_ref, *, alpha: float, beta: float, gamma: float):
    # Elementwise: tanh goes to the EUP, mul/add to the VPU. Compute in f32.
    x = x_ref[...].astype(jnp.float32)
    y = (alpha + jnp.tanh(beta * x)) * (gamma * x)
    o_ref[...] = y.astype(o_ref.dtype)


def aptx(x, alpha=1.0, beta=1.0, gamma=0.5):
    """APTx(x) = (alpha + tanh(beta*x)) * gamma * x, elementwise on any shape."""
    orig_shape = x.shape
    orig_dtype = x.dtype
    total = int(x.size)

    itemsize = jnp.dtype(orig_dtype).itemsize
    sublane = {4: 8, 2: 16, 1: 32}.get(itemsize, 8)

    cols = LANES
    rows_needed = (total + cols - 1) // cols
    # Tile rows: multiple of the sublane packing, capped so in+out double
    # buffering stays well under scoped VMEM on every generation (incl. v7x).
    tm = min(MAX_TILE_ROWS, _round_up(rows_needed, sublane))
    rows = _round_up(rows_needed, tm)

    padded_total = rows * cols
    flat = x.reshape(-1)
    if padded_total != total:
        flat = jnp.pad(flat, (0, padded_total - total))
    x2d = flat.reshape(rows, cols)

    grid = (rows // tm,)

    # VMEM budget: (in + out) x double buffer x tile bytes, plus headroom.
    tile_bytes = tm * cols * itemsize
    vmem_limit = int(min(max(4 * tile_bytes + (8 << 20), 16 << 20), 100 << 20))

    kernel = functools.partial(
        _aptx_kernel, alpha=float(alpha), beta=float(beta), gamma=float(gamma)
    )

    out2d = pl.pallas_call(
        kernel,
        out_shape=jax.ShapeDtypeStruct((rows, cols), orig_dtype),
        grid=grid,
        in_specs=[pl.BlockSpec((tm, cols), lambda i: (i, 0))],
        out_specs=pl.BlockSpec((tm, cols), lambda i: (i, 0)),
        compiler_params=pltpu.CompilerParams(
            dimension_semantics=("parallel",),
            vmem_limit_bytes=vmem_limit,
        ),
    )(x2d)

    return out2d.reshape(-1)[:total].reshape(orig_shape)


if __name__ == "__main__":
    key = jax.random.PRNGKey(0)
    # Small NCHW input consistent with a typical conv-net activation site.
    x = jax.random.normal(key, (2, 4, 16, 16), dtype=jnp.float32)

    out = aptx(x, alpha=1.0, beta=1.0, gamma=0.5)
    out = jax.block_until_ready(out)

    # Reference check against plain JAX.
    ref = (1.0 + jnp.tanh(1.0 * x)) * 0.5 * x
    assert out.shape == x.shape and out.dtype == x.dtype
    assert jnp.allclose(out, ref, atol=1e-6, rtol=1e-6)

    print("KERNEL_OK")
</pallas_src>

<mosaic_0001>
module attributes {stable_mosaic.version = 11 : i64} {
  func.func @_aptx_kernel(%arg0: i32, %arg1: memref<8x512xf32, #tpu.memory_space<vmem>>, %arg2: memref<8x512xf32, #tpu.memory_space<vmem>>) attributes {dimension_semantics = [#tpu.dimension_semantics<parallel>], iteration_bounds = array<i64: 1>, scalar_prefetch = 0 : i64, scratch_operands = 0 : i64, tpu.core_type = #tpu.core_type<tc>, window_params = [{transform_indices = @transform_0, window_bounds = array<i64: 8, 512>}, {transform_indices = @transform_1, window_bounds = array<i64: 8, 512>}]} {
    %c0 = arith.constant 0 : index
    %c0_0 = arith.constant 0 : index
    %0 = vector.load %arg1[%c0, %c0_0] : memref<8x512xf32, #tpu.memory_space<vmem>>, vector<8x512xf32>
    %cst = arith.constant 1.000000e+00 : f32
    %1 = vector.broadcast %cst : f32 to vector<8x512xf32>
    %2 = arith.mulf %1, %0 : vector<8x512xf32>
    %3 = math.tanh %2 : vector<8x512xf32>
    %cst_1 = arith.constant 1.000000e+00 : f32
    %4 = vector.broadcast %cst_1 : f32 to vector<8x512xf32>
    %5 = arith.addf %4, %3 : vector<8x512xf32>
    %cst_2 = arith.constant 5.000000e-01 : f32
    %6 = vector.broadcast %cst_2 : f32 to vector<8x512xf32>
    %7 = arith.mulf %6, %0 : vector<8x512xf32>
    %8 = arith.mulf %5, %7 : vector<8x512xf32>
    %c0_3 = arith.constant 0 : index
    %c0_4 = arith.constant 0 : index
    %9 = vector.load %arg2[%c0_3, %c0_4] : memref<8x512xf32, #tpu.memory_space<vmem>>, vector<8x512xf32>
    tpu.vector_store %arg2[%c0_3, %c0_4], %8 {strides = array<i32>} : memref<8x512xf32, #tpu.memory_space<vmem>>, vector<8x512xf32>,
    return
  }
  func.func @transform_0(%arg0: i32) -> (i32, i32) {
    %c0_i32 = arith.constant 0 : i32
    %c0_i32_0 = arith.constant 0 : i32
    return %arg0, %c0_i32 : i32, i32
  }
  func.func @transform_1(%arg0: i32) -> (i32, i32) {
    %c0_i32 = arith.constant 0 : i32
    %c0_i32_0 = arith.constant 0 : i32
    return %arg0, %c0_i32 : i32, i32
  }
}

</mosaic_0001>

<llo_original>
// kernel: tpu_custom_call.1
$region0: #{tpu_custom_call.1}
  #allocation0 [shape = 'u32[]', space=smem, size = 0x4, offset = 0x4, fixed_abs, tag = 'smem constant byte address 0x4 - core index']
  #allocation1 [shape = 'u32[72,128]{1,0:T(1,128)}', space=vmem, size = 0x9000, scoped, tag = 'internal scratch']
  %s0 = inlined_call_operand.hbm [shape: f32[8,512], index: 0, kind: input, shape index: {}]
  %s1 = inlined_call_operand.hbm [shape: f32[8,512], index: 1, kind: output, shape index: {}]
  %s2 = sld [smem:[#allocation0]]
  $region18: #{tpu_custom_call.1} parent=0
    _
  %s4 = ssub.s32 1, %s2
  %s5 = scalar_select 0, %s4, %s2
  $region1: #{tpu_custom_call.1} parent=0
    #allocation2 [shape = 'u8[16384]{0}', space=vmem, size = 0x4000, scoped, tag = 'input window, operand 0, single buffered']
    #allocation3 [shape = 's32[1]{0}', space=sflag, size = 0x4, scoped, tag = 'scoped memory for tpu_custom_call.1']
    #allocation4 [shape = 's32[1]{0}', space=sflag, size = 0x4, scoped, tag = 'scoped memory for tpu_custom_call.1']
    #allocation5 [shape = 'u8[16384]{0}', space=vmem, size = 0x4000, scoped, tag = 'output window, operand 0, single buffered']
    %6 = vsyncpa [#allocation3], 0
    %7 = vsyncpa [#allocation4], 0
    // Predicated region
    $region2: #{tpu_custom_call.1} parent=1 // pred_check
      _
    $region3: #{tpu_custom_call.1} parent=1 // pred_check_branch
      %9 = sbr.rel (0) target = $region5
    $region4: #{tpu_custom_call.1} parent=1 // pred_region
      %11 = vsyncadd [#allocation3], 0
      %s13 = sshll.u32 %s0, 4
      %s14 = int_to_ptr.hbm [resolvable:$true] %s13
      %s15 = sshll.u32 [#allocation2], 4
      %s16 = int_to_ptr.vmem [resolvable:$true] %s15
      %18 = dma.hbm_to_vmem [thread:$0]  %s14, 512, %s16, [#allocation3]
    $region5: #{tpu_custom_call.1} parent=1 // pred_fallthru
      _
    // Predicated region
    $region6: #{tpu_custom_call.1} parent=1 // pred_check
      _
    $region7: #{tpu_custom_call.1} parent=1 // pred_check_branch
      %20 = sbr.rel (0) target = $region9
    $region8: #{tpu_custom_call.1} parent=1 // pred_region
      %22 = dma.done [#allocation3], 512
    $region9: #{tpu_custom_call.1} parent=1 // pred_fallthru
      _
    %v23 = vld [vmem:[#allocation2] sm:$0xff]
    %v24 = vld [vmem:[#allocation2 + $0x8] sm:$0xff]
    %v25 = vld [vmem:[#allocation2 + $0x10] sm:$0xff]
    %v26 = vld [vmem:[#allocation2 + $0x18] sm:$0xff]
    %v27 = vtanh.pop %v23
    %v28 = vtanh.pop %v24
    %v29 = vtanh.pop %v25
    %v30 = vtanh.pop %v26
    %v31 = vadd.f32 %v27, 1.0
    %v32 = vadd.f32 %v28, 1.0
    %v33 = vadd.f32 %v29, 1.0
    %v34 = vadd.f32 %v30, 1.0
    %v35 = vmul.f32 %v23, 0.5
    %v36 = vmul.f32 %v24, 0.5
    %v37 = vmul.f32 %v25, 0.5
    %v38 = vmul.f32 %v26, 0.5
    %v39 = vmul.f32 %v31, %v35
    %v40 = vmul.f32 %v32, %v36
    %v41 = vmul.f32 %v33, %v37
    %v42 = vmul.f32 %v34, %v38
    %43 = vst [vmem:[#allocation5] sm:$0xff] %v39
    %44 = vst [vmem:[#allocation5 + $0x8] sm:$0xff] %v40
    %45 = vst [vmem:[#allocation5 + $0x10] sm:$0xff] %v41
    %46 = vst [vmem:[#allocation5 + $0x18] sm:$0xff] %v42
    // Predicated region
    $region10: #{tpu_custom_call.1} parent=1 // pred_check
      _
    $region11: #{tpu_custom_call.1} parent=1 // pred_check_branch
      %48 = sbr.rel (0) target = $region13
    $region12: #{tpu_custom_call.1} parent=1 // pred_region
      %50 = vsyncadd [#allocation4], 0
      %s52 = sshll.u32 [#allocation5], 4
      %s53 = int_to_ptr.vmem [resolvable:$true] %s52
      %s54 = sshll.u32 %s1, 4
      %s55 = int_to_ptr.hbm [resolvable:$true] %s54
      %57 = dma.vmem_to_hbm [thread:$0]  %s53, 512, %s55, [#allocation4]
    $region13: #{tpu_custom_call.1} parent=1 // pred_fallthru
      _
    // Predicated region
    $region14: #{tpu_custom_call.1} parent=1 // pred_check
      _
    $region15: #{tpu_custom_call.1} parent=1 // pred_check_branch
      %59 = sbr.rel (0) target = $region17
    $region16: #{tpu_custom_call.1} parent=1 // pred_region
      %61 = dma.done [#allocation4], 512
    $region17: #{tpu_custom_call.1} parent=1 // pred_fallthru
      _
    %62 = vsyncpa [#allocation3], 1
    %63 = vsyncpa [#allocation4], 1

</llo_original>
